<compile_context>
chip_gen: v6e
topology: v6e:2x2x1
jax: 0.10.0
libtpu: 0.0.40
codegen_flags: <defaults>
</compile_context>

<pallas_src>
import jax
import jax.numpy as jnp
from jax.experimental import pallas as pl
from jax.experimental.pallas import tpu as pltpu


def _round_up(x, m):
    return (x + m - 1) // m * m


def _default_tile_n():
    """Output-channel block width: 256 on v6e/v7x (2x256^2 MXU), 128 on v5e (4x128^2)."""
    try:
        info = pltpu.get_tpu_info()
        ver = str(getattr(info, "chip_version", getattr(info, "version", ""))).lower()
        if "5" in ver:
            return 128
    except Exception:  # interpret mode / CPU AOT / API drift — fall back safely
        pass
    return 256


def _conv_stats_kernel(p_ref, w_ref, y_ref, ps_ref):
    # (TM, Kp) @ (Kp, TN) on the MXU: bf16 operands, f32 accumulation.
    y = jnp.dot(p_ref[...], w_ref[...], preferred_element_type=jnp.float32)
    # Per-channel partial BN sums for this M tile, in f32 BEFORE the bf16 downcast of
    # the stored temp (axis-0 reduce -> XLU slot, overlaps the MXU). Slice stores —
    # no concatenate relayout.
    ps_ref[0, 0:1, :] = jnp.sum(y, axis=0, keepdims=True)
    ps_ref[0, 1:2, :] = jnp.sum(y * y, axis=0, keepdims=True)
    y_ref[...] = y.astype(y_ref.dtype)


def _bn_relu_kernel(y_ref, scale_ref, shift_ref, o_ref):
    # Pure HBM streaming: y * scale + shift, then ReLU.
    y = y_ref[...].astype(jnp.float32)
    o_ref[...] = jnp.maximum(y * scale_ref[...] + shift_ref[...], 0.0).astype(o_ref.dtype)


def _im2col_bf16(x_nchw, kh, kw, stride, pad, mp, kp, dtype):
    """Patch matrix built directly in `dtype` with the (Mp, Kp) zero-pad folded in."""
    N, C, H, W = x_nchw.shape
    xq = jnp.pad(x_nchw.astype(dtype), ((0, 0), (0, 0), (pad, pad), (pad, pad)))
    Ho = (H + 2 * pad - kh) // stride + 1
    Wo = (W + 2 * pad - kw) // stride + 1
    cols = []
    for i in range(kh):
        for j in range(kw):
            cols.append(xq[:, :, i:i + stride * Ho:stride, j:j + stride * Wo:stride])
    patches = jnp.stack(cols, axis=2)                  # (N, C, kh*kw, Ho, Wo)
    patches = jnp.transpose(patches, (0, 3, 4, 1, 2))  # (N, Ho, Wo, C, kh*kw)
    patches = patches.reshape(N * Ho * Wo, C * kh * kw)
    M, K = patches.shape
    return jnp.pad(patches, ((0, mp - M), (0, kp - K)))


def crelu_forward(x_nchw, weight, gamma, beta, *, stride=1, padding=1, eps=1e-5,
                  tile_m=256, tile_m2=1024, tile_n=None,
                  compute_dtype=jnp.bfloat16, out_layout="NCHW"):
    """x_nchw: (N, Cin, H, W); weight: (Cout, Cin, KH, KW) (PyTorch layouts)."""
    N, Cin, H, W = x_nchw.shape
    Cout, _, KH, KW = weight.shape
    Ho = (H + 2 * padding - KH) // stride + 1
    Wo = (W + 2 * padding - KW) // stride + 1
    M = N * Ho * Wo
    K = Cin * KH * KW

    # Lane-dense padding of the contraction and channel dims.
    Kp = _round_up(K, 128)
    Cp = _round_up(Cout, 128)

    # Output-channel tiling (bounds the resident weight block on big layers).
    if tile_n is None:
        tile_n = _default_tile_n()
    TN = _round_up(min(tile_n, Cp), 128)
    while Cp % TN:
        TN -= 128
    n_c = Cp // TN

    # Pass-1 M tile (matmul working set); keep >= 2 blocks so the "parallel" M axis
    # can shard across both TensorCores on v7x.
    TM = max(16, min(_round_up(tile_m, 16), _round_up(M, 16)))
    while TM > 16 and _round_up(M, TM) // TM < 2:
        TM = max(16, _round_up(TM // 2, 16))
    # Pass-2 M tile: larger (pure streaming), kept a multiple of TM so both grids
    # share one padded M extent; also prefer >= 2 blocks.
    f = max(1, _round_up(tile_m2, 16) // TM)
    while f > 1 and _round_up(M, TM * f) // (TM * f) < 2:
        f = max(1, f // 2)
    TM2 = TM * f
    Mp = _round_up(M, TM2)          # multiple of both TM and TM2
    n_m1 = Mp // TM
    n_m2 = Mp // TM2

    # Inputs, already in bf16 with padding folded in (single amplified materialization).
    p_pad = _im2col_bf16(x_nchw, KH, KW, stride, padding, Mp, Kp, compute_dtype)
    w_mat = weight.reshape(Cout, K).T                               # (K, Cout)
    w_pad = jnp.pad(w_mat.astype(compute_dtype), ((0, Kp - K), (0, Cp - Cout)))

    # Explicit VMEM budgets: double-buffered blocks + headroom. v5e's scoped default is
    # only 16 MiB; v6e default 32 MiB; v7x physical VMEM is 64 MiB (so stay <= 32 MiB).
    est1 = 2 * TM * Kp * 2 + 2 * Kp * TN * 2 + 2 * TM * TN * 2 + 2 * 2 * TN * 4
    est2 = 2 * TM2 * TN * 2 + 2 * TM2 * TN * 4 + 4 * TN * 4
    vmem1 = int(min(max(2 * est1 + (2 << 20), 8 << 20), 32 << 20))
    vmem2 = int(min(max(2 * est2 + (2 << 20), 8 << 20), 32 << 20))

    # Pass 1: tiled conv matmul + per-tile partial BN sums; conv temp stored in bf16.
    y_tmp, part_stats = pl.pallas_call(
        _conv_stats_kernel,
        out_shape=(jax.ShapeDtypeStruct((Mp, Cp), compute_dtype),
                   jax.ShapeDtypeStruct((n_m1, 2, Cp), jnp.float32)),
        grid=(n_m1, n_c),
        in_specs=[
            pl.BlockSpec((TM, Kp), lambda i, c: (i, 0)),
            pl.BlockSpec((Kp, TN), lambda i, c: (0, c)),
        ],
        out_specs=(
            pl.BlockSpec((TM, TN), lambda i, c: (i, c)),
            pl.BlockSpec((1, 2, TN), lambda i, c: (i, 0, c)),
        ),
        compiler_params=pltpu.CompilerParams(
            dimension_semantics=("parallel", "parallel"),
            vmem_limit_bytes=vmem1),
    )(p_pad, w_pad)

    # Finalize training-mode BN stats over the true M (zero-padded rows contribute 0 to
    # both sums) and fold them with gamma/beta into per-channel scale/shift.  Padded
    # channels get exact scale = shift = 0, so pass 2 emits exact zeros there.
    stats = jnp.sum(part_stats, axis=0)[:, :Cout]        # (2, Cout) f32
    mean = stats[0] / M
    var = jnp.maximum(stats[1] / M - mean * mean, 0.0)   # biased variance (training mode)
    scale = gamma.astype(jnp.float32) * jax.lax.rsqrt(var + eps)
    shift = beta.astype(jnp.float32) - mean * scale
    scale_p = jnp.pad(scale.reshape(1, Cout), ((0, 0), (0, Cp - Cout)))
    shift_p = jnp.pad(shift.reshape(1, Cout), ((0, 0), (0, Cp - Cout)))

    # Pass 2: normalize + affine + ReLU, streamed with large lane-dense tiles.
    out_flat = pl.pallas_call(
        _bn_relu_kernel,
        out_shape=jax.ShapeDtypeStruct((Mp, Cp), jnp.float32),
        grid=(n_m2, n_c),
        in_specs=[
            pl.BlockSpec((TM2, TN), lambda i, c: (i, c)),
            pl.BlockSpec((1, TN), lambda i, c: (0, c)),
            pl.BlockSpec((1, TN), lambda i, c: (0, c)),
        ],
        out_specs=pl.BlockSpec((TM2, TN), lambda i, c: (i, c)),
        compiler_params=pltpu.CompilerParams(
            dimension_semantics=("parallel", "parallel"),
            vmem_limit_bytes=vmem2),
    )(y_tmp, scale_p, shift_p)

    out_nhwc = out_flat[:M, :Cout].reshape(N, Ho, Wo, Cout)
    if out_layout == "NHWC":
        # Cheaper when the consumer accepts channels-last: skips a full HBM pass for
        # the layout flip and keeps the kernel output lane-dense.
        return out_nhwc
    return jnp.transpose(out_nhwc, (0, 3, 1, 2))          # PyTorch NCHW contract


def _reference(x, weight, gamma, beta, *, stride, padding, eps, conv_dtype):
    y = jax.lax.conv_general_dilated(
        x.astype(conv_dtype), weight.astype(conv_dtype),
        window_strides=(stride, stride),
        padding=((padding, padding), (padding, padding)),
        dimension_numbers=("NCHW", "OIHW", "NCHW"),
        preferred_element_type=jnp.float32,
        precision=jax.lax.Precision.HIGHEST)
    mean = jnp.mean(y, axis=(0, 2, 3), keepdims=True)
    var = jnp.mean((y - mean) ** 2, axis=(0, 2, 3), keepdims=True)
    y_hat = (y - mean) * jax.lax.rsqrt(var + eps)
    out = y_hat * gamma.reshape(1, -1, 1, 1) + beta.reshape(1, -1, 1, 1)
    return jnp.maximum(out, 0.0)


if __name__ == "__main__":
    key = jax.random.PRNGKey(0)
    k_x, k_w, k_g, k_b = jax.random.split(key, 4)

    N, Cin, H, W = 2, 4, 16, 16
    Cout, KH, KW = 8, 3, 3

    x = jax.random.normal(k_x, (N, Cin, H, W), dtype=jnp.float32)
    weight = jax.random.normal(k_w, (Cout, Cin, KH, KW), dtype=jnp.float32) * 0.1
    gamma = 1.0 + 0.1 * jax.random.normal(k_g, (Cout,), dtype=jnp.float32)
    beta = 0.1 * jax.random.normal(k_b, (Cout,), dtype=jnp.float32)

    out = crelu_forward(x, weight, gamma, beta, stride=1, padding=1, eps=1e-5)
    out = jax.block_until_ready(out)
    assert out.shape == (N, Cout, H, W), out.shape

    # Check vs a reference that also uses bf16 conv operands / f32 accumulation
    # (tolerance accounts for the bf16 round-trip of the conv temp).
    ref_bf16 = _reference(x, weight, gamma, beta, stride=1, padding=1, eps=1e-5,
                          conv_dtype=jnp.bfloat16)
    err_bf16 = float(jnp.max(jnp.abs(out - ref_bf16)))
    assert jnp.allclose(out, ref_bf16, atol=3e-2, rtol=3e-2), err_bf16

    # Loose sanity check vs the pure-f32 PyTorch-equivalent reference (difference is
    # only the deliberate bf16 casts of the matmul operands and the conv temp).
    ref_f32 = _reference(x, weight, gamma, beta, stride=1, padding=1, eps=1e-5,
                         conv_dtype=jnp.float32)
    err_f32 = float(jnp.max(jnp.abs(out - ref_f32)))
    assert jnp.allclose(out, ref_f32, atol=8e-2, rtol=8e-2), err_f32

    print("KERNEL_OK")
</pallas_src>

<mosaic_0001>
module attributes {stable_mosaic.version = 11 : i64} {
  func.func @_conv_stats_kernel(%arg0: i32, %arg1: i32, %arg2: memref<256x128xbf16, #tpu.memory_space<vmem>>, %arg3: memref<128x128xbf16, #tpu.memory_space<vmem>>, %arg4: memref<256x128xbf16, #tpu.memory_space<vmem>>, %arg5: memref<1x2x128xf32, #tpu.memory_space<vmem>>) attributes {dimension_semantics = [#tpu.dimension_semantics<parallel>, #tpu.dimension_semantics<parallel>], iteration_bounds = array<i64: 2, 1>, scalar_prefetch = 0 : i64, scratch_operands = 0 : i64, tpu.core_type = #tpu.core_type<tc>, window_params = [{transform_indices = @transform_0, window_bounds = array<i64: 256, 128>}, {transform_indices = @transform_1, window_bounds = array<i64: 128, 128>}, {transform_indices = @transform_2, window_bounds = array<i64: 256, 128>}, {transform_indices = @transform_3, window_bounds = array<i64: 1, 2, 128>}]} {
    %c0 = arith.constant 0 : index
    %c0_0 = arith.constant 0 : index
    %0 = vector.load %arg2[%c0, %c0_0] : memref<256x128xbf16, #tpu.memory_space<vmem>>, vector<256x128xbf16>
    %c0_1 = arith.constant 0 : index
    %c0_2 = arith.constant 0 : index
    %1 = vector.load %arg3[%c0_1, %c0_2] : memref<128x128xbf16, #tpu.memory_space<vmem>>, vector<128x128xbf16>
    %cst = arith.constant dense<0.000000e+00> : vector<256x128xf32>
    %2 = tpu.matmul %0, %1, %cst {dimension_numbers = #tpu.dot_dimension_numbers<[1], [0], [0], [1], [0, 0, 1, 1], [], []>} : vector<256x128xbf16>, vector<128x128xbf16>, vector<256x128xf32> -> vector<256x128xf32>
    %cst_3 = arith.constant dense<0.000000e+00> : vector<128xf32>
    %3 = vector.multi_reduction <add>, %2, %cst_3 [0] : vector<256x128xf32> to vector<128xf32>
    %4 = vector.shape_cast %3 : vector<128xf32> to vector<1x128xf32>
    %c0_4 = arith.constant 0 : index
    %c0_5 = arith.constant 0 : index
    %c0_6 = arith.constant 0 : index
    %5 = vector.load %arg5[%c0_4, %c0_5, %c0_6] : memref<1x2x128xf32, #tpu.memory_space<vmem>>, vector<1x1x128xf32>
    %6 = vector.shape_cast %5 : vector<1x1x128xf32> to vector<1x128xf32>
    %7 = vector.shape_cast %4 : vector<1x128xf32> to vector<1x1x128xf32>
    tpu.vector_store %arg5[%c0_4, %c0_5, %c0_6], %7 {strides = array<i32>} : memref<1x2x128xf32, #tpu.memory_space<vmem>>, vector<1x1x128xf32>,
    %8 = arith.mulf %2, %2 : vector<256x128xf32>
    %cst_7 = arith.constant dense<0.000000e+00> : vector<128xf32>
    %9 = vector.multi_reduction <add>, %8, %cst_7 [0] : vector<256x128xf32> to vector<128xf32>
    %10 = vector.shape_cast %9 : vector<128xf32> to vector<1x128xf32>
    %c0_8 = arith.constant 0 : index
    %c1 = arith.constant 1 : index
    %c0_9 = arith.constant 0 : index
    %11 = vector.load %arg5[%c0_8, %c1, %c0_9] : memref<1x2x128xf32, #tpu.memory_space<vmem>>, vector<1x1x128xf32>
    %12 = vector.shape_cast %11 : vector<1x1x128xf32> to vector<1x128xf32>
    %13 = vector.shape_cast %10 : vector<1x128xf32> to vector<1x1x128xf32>
    tpu.vector_store %arg5[%c0_8, %c1, %c0_9], %13 {strides = array<i32>} : memref<1x2x128xf32, #tpu.memory_space<vmem>>, vector<1x1x128xf32>,
    %14 = arith.truncf %2 : vector<256x128xf32> to vector<256x128xbf16>
    %c0_10 = arith.constant 0 : index
    %c0_11 = arith.constant 0 : index
    %15 = vector.load %arg4[%c0_10, %c0_11] : memref<256x128xbf16, #tpu.memory_space<vmem>>, vector<256x128xbf16>
    tpu.vector_store %arg4[%c0_10, %c0_11], %14 {strides = array<i32>} : memref<256x128xbf16, #tpu.memory_space<vmem>>, vector<256x128xbf16>,
    return
  }
  func.func @transform_0(%arg0: i32, %arg1: i32) -> (i32, i32) {
    %c0_i32 = arith.constant 0 : i32
    %c0_i32_0 = arith.constant 0 : i32
    return %arg0, %c0_i32 : i32, i32
  }
  func.func @transform_1(%arg0: i32, %arg1: i32) -> (i32, i32) {
    %c0_i32 = arith.constant 0 : i32
    %c0_i32_0 = arith.constant 0 : i32
    return %c0_i32, %arg1 : i32, i32
  }
  func.func @transform_2(%arg0: i32, %arg1: i32) -> (i32, i32) {
    %c0_i32 = arith.constant 0 : i32
    return %arg0, %arg1 : i32, i32
  }
  func.func @transform_3(%arg0: i32, %arg1: i32) -> (i32, i32, i32) {
    %c0_i32 = arith.constant 0 : i32
    %c0_i32_0 = arith.constant 0 : i32
    return %arg0, %c0_i32, %arg1 : i32, i32, i32
  }
}

</mosaic_0001>

<llo_original>
// kernel: tpu_custom_call.1
$region0: #{tpu_custom_call.1}
  #allocation0 [shape = 'u32[]', space=smem, size = 0x4, offset = 0x4, fixed_abs, tag = 'smem constant byte address 0x4 - core index']
  #allocation1 [shape = 'u32[144,128]{1,0:T(1,128)}', space=vmem, size = 0x12000, scoped, tag = 'internal scratch']
  %s0 = inlined_call_operand.hbm [shape: bf16[512,128], index: 0, kind: input, shape index: {}]
  %s1 = inlined_call_operand.hbm [shape: bf16[128,128], index: 1, kind: input, shape index: {}]
  %s2 = inlined_call_operand.hbm [shape: bf16[512,128], index: 2, kind: output, shape index: {0}]
  %s3 = inlined_call_operand.hbm [shape: f32[2,2,128], index: 3, kind: output, shape index: {1}]
  %4 = xla_tuple %s2, %s3
  %s5 = sld [smem:[#allocation0]]
  $region57: #{tpu_custom_call.1} parent=0
    _
  %s7 = ssub.s32 1, %s5
  %s8 = scalar_select 0, %s7, %s5
  $region1: #{tpu_custom_call.1} parent=0
    #allocation2 [shape = 'u8[131072]{0}', space=vmem, size = 0x20000, scoped, tag = 'input window, operand 0']
    #allocation3 [shape = 's32[2]{0}', space=sflag, size = 0x8, scoped, tag = 'scoped memory for tpu_custom_call.1']
    #allocation4 [shape = 's32[2]{0}', space=sflag, size = 0x8, scoped, tag = 'scoped memory for tpu_custom_call.1']
    #allocation5 [shape = 'u8[32768]{0}', space=vmem, size = 0x8000, scoped, tag = 'input window, operand 1, single buffered']
    #allocation6 [shape = 's32[1]{0}', space=sflag, size = 0x4, scoped, tag = 'scoped memory for tpu_custom_call.1']
    #allocation7 [shape = 'u8[131072]{0}', space=vmem, size = 0x20000, scoped, tag = 'output window, operand 0']
    #allocation8 [shape = 'u8[2048]{0}', space=vmem, size = 0x800, scoped, tag = 'output window, operand 1']
    #allocation9 [shape = 's32[2]{0}', space=sflag, size = 0x8, scoped, tag = 'scoped memory for tpu_custom_call.1']
    %9 = vsyncpa [#allocation3], 0
    %s10 = scalar_lea.sflag [#allocation3], 1
    %11 = vsyncpa %s10, 0
    %12 = vsyncpa [#allocation6], 0
    %13 = vsyncpa [#allocation4], 0
    %s14 = scalar_lea.sflag [#allocation4], 1
    %15 = vsyncpa %s14, 0
    %16 = vsyncpa [#allocation9], 0
    %s17 = scalar_lea.sflag [#allocation9], 1
    %18 = vsyncpa %s17, 0
    loop: start=0, step=1, limit=4
    $region2: #{tpu_custom_call.1} parent=1 // loop_pre_header
      _
    $region3: #{tpu_custom_call.1} parent=1 // loop_header
      %s20 = sphi 0, %s24
      %p21 = scmp.ge.s32.totalorder %s20, 4
      %s27 = sphi 0, %s39
      %s28 = sphi 0, %s35
      %s29 = sphi 0, %s27
      %s30 = sphi 0, %s28
      %s31 = sphi 0, %s29
      %s32 = sphi 0, %s30
      %s42 = sphi 0, %s44
      %s45 = sphi 0, %s42
      %s46 = sphi 0, %s45
      %s62 = sphi 0, %s46
      %s68 = sphi 0, %s70
      %s71 = sphi 0, %s68
      %s72 = sphi 0, %s71
      %s88 = sphi 0, %s72
      %s96 = sphi 0, %s98
      %s99 = sphi 0, %s96
      %s100 = sphi 0, %s99
      %s116 = sphi 0, %s100
      %s124 = sphi 0, %s126
      %s127 = sphi 0, %s124
      %s128 = sphi 0, %s127
      %s144 = sphi 0, %s128
    $region4: #{tpu_custom_call.1} parent=1 // loop_header_branch
      %23 = sbr.rel (%p21) target = $region8
    $region5: #{tpu_custom_call.1} parent=1 // loop_body
      %s25 = ssub.s32 %s20, 1
      %s26 = ssub.s32 %s20, 2
      %s33 = sadd.s32 1, %s28
      %p34 = scmp.ge.s32.totalorder %s33, 1
      %s35 = scalar_select %p34, 0, %s33
      %s36 = sadd.s32 1, %s27
      %s37 = scalar_select %p34, %s36, %s27
      %p38 = scmp.ge.s32.totalorder %s37, 2
      %s39 = scalar_select %p38, 0, %s37
      %s40 = ssub.s32 %s27, %s39
      %p41 = scmp.eq.s32.totalorder %s40, 0
      %s43 = sadd.s32 %s42, 1
      %s44 = scalar_select %p41, %s42, %s43
      %p47 = pneg %p41
      %p48 = scmp.eq.s32.totalorder %s20, 1
      %p49 = por %p47, %p48
      %p50 = scmp.ne.s32.totalorder %s42, %s45
      %p51 = scmp.eq.s32.totalorder %s20, 0
      %p52 = por %p50, %p51
      %p53 = scmp.ne.s32.totalorder %s42, %s45
      %p54 = scmp.eq.s32.totalorder %s25, 1
      %p55 = por %p53, %p54
      %p56 = scmp.ne.s32.totalorder %s45, %s46
      %p57 = scmp.eq.s32.totalorder %s25, 0
      %p58 = por %p56, %p57
      %p59 = scmp.ne.s32.totalorder %s45, %s46
      %p60 = scmp.eq.s32.totalorder %s26, 1
      %p61 = por %p59, %p60
      %p63 = scmp.ne.s32.totalorder %s46, %s62
      %p64 = scmp.eq.s32.totalorder %s26, 0
      %p65 = por %p63, %p64
      %s66 = ssub.s32 %s28, %s35
      %p67 = scmp.eq.s32.totalorder %s66, 0
      %s69 = sadd.s32 %s68, 1
      %s70 = scalar_select %p67, %s68, %s69
      %p73 = pneg %p67
      %p74 = scmp.eq.s32.totalorder %s20, 1
      %p75 = por %p73, %p74
      %p76 = scmp.ne.s32.totalorder %s68, %s71
      %p77 = scmp.eq.s32.totalorder %s20, 0
      %p78 = por %p76, %p77
      %p79 = scmp.ne.s32.totalorder %s68, %s71
      %p80 = scmp.eq.s32.totalorder %s25, 1
      %p81 = por %p79, %p80
      %p82 = scmp.ne.s32.totalorder %s71, %s72
      %p83 = scmp.eq.s32.totalorder %s25, 0
      %p84 = por %p82, %p83
      %p85 = scmp.ne.s32.totalorder %s71, %s72
      %p86 = scmp.eq.s32.totalorder %s26, 1
      %p87 = por %p85, %p86
      %p89 = scmp.ne.s32.totalorder %s72, %s88
      %p90 = scmp.eq.s32.totalorder %s26, 0
      %p91 = por %p89, %p90
      %s92 = ssub.s32 %s27, %s39
      %s93 = ssub.s32 %s28, %s35
      %s94 = sor.u32 %s92, %s93
      %p95 = scmp.eq.s32.totalorder %s94, 0
      %s97 = sadd.s32 %s96, 1
      %s98 = scalar_select %p95, %s96, %s97
      %p101 = pneg %p95
      %p102 = scmp.eq.s32.totalorder %s20, 1
      %p103 = por %p101, %p102
      %p104 = scmp.ne.s32.totalorder %s96, %s99
      %p105 = scmp.eq.s32.totalorder %s20, 0
      %p106 = por %p104, %p105
      %p107 = scmp.ne.s32.totalorder %s96, %s99
      %p108 = scmp.eq.s32.totalorder %s25, 1
      %p109 = por %p107, %p108
      %p110 = scmp.ne.s32.totalorder %s99, %s100
      %p111 = scmp.eq.s32.totalorder %s25, 0
      %p112 = por %p110, %p111
      %p113 = scmp.ne.s32.totalorder %s99, %s100
      %p114 = scmp.eq.s32.totalorder %s26, 1
      %p115 = por %p113, %p114
      %p117 = scmp.ne.s32.totalorder %s100, %s116
      %p118 = scmp.eq.s32.totalorder %s26, 0
      %p119 = por %p117, %p118
      %s120 = ssub.s32 %s27, %s39
      %s121 = ssub.s32 %s28, %s35
      %s122 = sor.u32 %s120, %s121
      %p123 = scmp.eq.s32.totalorder %s122, 0
      %s125 = sadd.s32 %s124, 1
      %s126 = scalar_select %p123, %s124, %s125
      %p129 = pneg %p123
      %p130 = scmp.eq.s32.totalorder %s20, 1
      %p131 = por %p129, %p130
      %p132 = scmp.ne.s32.totalorder %s124, %s127
      %p133 = scmp.eq.s32.totalorder %s20, 0
      %p134 = por %p132, %p133
      %p135 = scmp.ne.s32.totalorder %s124, %s127
      %p136 = scmp.eq.s32.totalorder %s25, 1
      %p137 = por %p135, %p136
      %p138 = scmp.ne.s32.totalorder %s127, %s128
      %p139 = scmp.eq.s32.totalorder %s25, 0
      %p140 = por %p138, %p139
      %p141 = scmp.ne.s32.totalorder %s127, %s128
      %p142 = scmp.eq.s32.totalorder %s26, 1
      %p143 = por %p141, %p142
      %p145 = scmp.ne.s32.totalorder %s128, %s144
      %p146 = scmp.eq.s32.totalorder %s26, 0
      %p147 = por %p145, %p146
      %p148 = scmp.le.s32.totalorder 1, %s20
      %p149 = scmp.lt.s32.totalorder %s20, 3
      %p150 = pnand %p148, %p149
      %p151 = pneg %p150
      // Predicated region
      $region9: #{tpu_custom_call.1} parent=5 // pred_check
        _
      $region10: #{tpu_custom_call.1} parent=5 // pred_check_branch
        %153 = sbr.rel (%p150) target = $region12
      $region11: #{tpu_custom_call.1} parent=5 // pred_region
        %s154 = ssub.s32 %s20, 1
        // Predicated region
        $region13: #{tpu_custom_call.1} parent=11 // pred_check
          %p155 = pneg %p84
        $region14: #{tpu_custom_call.1} parent=11 // pred_check_branch
          %157 = sbr.rel (%p155) target = $region16
        $region15: #{tpu_custom_call.1} parent=11 // pred_region
          %s159 = ssub.s32 1024, 1024
          %160 = vsyncadd [#allocation6], %s159
          %s161 = smul.addr %s30, 64
          %s162 = scalar_lea.hbm %s1, %s161
          %s163 = sshll.u32 [#allocation5], 4
          %s164 = int_to_ptr.vmem [resolvable:$true] %s163
          %169 = dma.hbm_to_vmem [thread:$0]  %s162, 1024, %s164, [#allocation6], 64, 64, 4
        $region16: #{tpu_custom_call.1} parent=11 // pred_fallthru
          _
      $region12: #{tpu_custom_call.1} parent=5 // pred_fallthru
        _
      %p170 = scmp.lt.s32.totalorder %s20, 2
      // Predicated region
      $region17: #{tpu_custom_call.1} parent=5 // pred_check
        %p171 = pneg %p170
      $region18: #{tpu_custom_call.1} parent=5 // pred_check_branch
        %173 = sbr.rel (%p171) target = $region20
      $region19: #{tpu_custom_call.1} parent=5 // pred_region
        // Predicated region
        $region21: #{tpu_custom_call.1} parent=19 // pred_check
          %p174 = pneg %p52
        $region22: #{tpu_custom_call.1} parent=19 // pred_check_branch
          %176 = sbr.rel (%p174) target = $region24
        $region23: #{tpu_custom_call.1} parent=19 // pred_region
          %s177 = sand.u32 %s42, 1
          %s178 = scalar_lea.sflag [#allocation3], %s177
          %s179 = sand.u32 %s42, 1
          %s180 = smul.addr %s179, 128
          %s181 = scalar_lea.vmem [#allocation2], %s180
          %s182 = smul.u32 32, %s27
          %s184 = ssub.s32 2048, 2048
          %185 = vsyncadd %s178, %s184
          %s186 = smul.addr %s182, 64
          %s187 = scalar_lea.hbm %s0, %s186
          %s188 = sshll.u32 %s181, 4
          %s189 = int_to_ptr.vmem [resolvable:$true] %s188
          %194 = dma.hbm_to_vmem [thread:$0]  %s187, 2048, %s189, %s178, 64, 64, 4
        $region24: #{tpu_custom_call.1} parent=19 // pred_fallthru
          _
      $region20: #{tpu_custom_call.1} parent=5 // pred_fallthru
        _
      %p195 = scmp.le.s32.totalorder 1, %s20
      %p196 = scmp.lt.s32.totalorder %s20, 3
      %p197 = pnand %p195, %p196
      %p198 = pneg %p197
      // Predicated region
      $region25: #{tpu_custom_call.1} parent=5 // pred_check
        _
      $region26: #{tpu_custom_call.1} parent=5 // pred_check_branch
        %200 = sbr.rel (%p197) target = $region28
      $region27: #{tpu_custom_call.1} parent=5 // pred_region
        %s201 = ssub.s32 %s20, 1
        %s202 = sand.u32 %s45, 1
        %s203 = scalar_lea.sflag [#allocation3], %s202
        %s204 = sand.u32 %s45, 1
        %s205 = smul.addr %s204, 128
        %s206 = scalar_lea.vmem [#allocation2], %s205
        // Predicated region
        $region29: #{tpu_custom_call.1} parent=27 // pred_check
          %p207 = pneg %p58
        $region30: #{tpu_custom_call.1} parent=27 // pred_check_branch
          %209 = sbr.rel (%p207) target = $region32
        $region31: #{tpu_custom_call.1} parent=27 // pred_region
          %210 = dma.done %s203, 2048
        $region32: #{tpu_custom_call.1} parent=27 // pred_fallthru
          _
        // Predicated region
        $region33: #{tpu_custom_call.1} parent=27 // pred_check
          %p211 = pneg %p84
        $region34: #{tpu_custom_call.1} parent=27 // pred_check_branch
          %213 = sbr.rel (%p211) target = $region36
        $region35: #{tpu_custom_call.1} parent=27 // pred_region
          %214 = dma.done [#allocation6], 1024
        $region36: #{tpu_custom_call.1} parent=27 // pred_fallthru
          _
        %s215 = sand.u32 %s45, 1
        %s216 = scalar_lea.sflag [#allocation3], %s215
        %s217 = sand.u32 %s45, 1
        %s218 = smul.addr %s217, 128
        %s219 = scalar_lea.vmem [#allocation2], %s218
        %p220 = pneg %p58
        %p221 = pneg %p55
        %p222 = pneg %p84
        %p223 = pneg %p81
        %p224 = pneg %p112
        %p225 = pneg %p109
        %s226 = sand.u32 %s99, 1
        %s227 = scalar_lea.sflag [#allocation4], %s226
        %s228 = sand.u32 %s99, 1
        %s229 = smul.addr %s228, 128
        %s230 = scalar_lea.vmem [#allocation7], %s229
        %p231 = pneg %p140
        %p232 = pneg %p137
        %s233 = sand.u32 %s127, 1
        %s234 = scalar_lea.sflag [#allocation9], %s233
        %s235 = sand.u32 %s127, 1
        %s236 = smul.addr %s235, 2
        %s237 = scalar_lea.vmem [#allocation8], %s236
        %s238 = smul.u32 32, %s29
        %s239 = smul.u32 32, %s29
        %v241 = vld [vmem:[%s206] sm:$0xf]
        %v242 = vld [vmem:[%s206 + $0x4] sm:$0xf]
        %v243 = vld [vmem:[%s206 + $0x8] sm:$0xf]
        %v244 = vld [vmem:[%s206 + $0xc] sm:$0xf]
        %v245 = vld [vmem:[%s206 + $0x10] sm:$0xf]
        %v246 = vld [vmem:[%s206 + $0x14] sm:$0xf]
        %v247 = vld [vmem:[%s206 + $0x18] sm:$0xf]
        %v248 = vld [vmem:[%s206 + $0x1c] sm:$0xf]
        %v249 = vld [vmem:[%s206 + $0x20] sm:$0xf]
        %v250 = vld [vmem:[%s206 + $0x24] sm:$0xf]
        %v251 = vld [vmem:[%s206 + $0x28] sm:$0xf]
        %v252 = vld [vmem:[%s206 + $0x2c] sm:$0xf]
        %v253 = vld [vmem:[%s206 + $0x30] sm:$0xf]
        %v254 = vld [vmem:[%s206 + $0x34] sm:$0xf]
        %v255 = vld [vmem:[%s206 + $0x38] sm:$0xf]
        %v256 = vld [vmem:[%s206 + $0x3c] sm:$0xf]
        %v257 = vld [vmem:[%s206 + $0x40] sm:$0xf]
        %v258 = vld [vmem:[%s206 + $0x44] sm:$0xf]
        %v259 = vld [vmem:[%s206 + $0x48] sm:$0xf]
        %v260 = vld [vmem:[%s206 + $0x4c] sm:$0xf]
        %v261 = vld [vmem:[%s206 + $0x50] sm:$0xf]
        %v262 = vld [vmem:[%s206 + $0x54] sm:$0xf]
        %v263 = vld [vmem:[%s206 + $0x58] sm:$0xf]
        %v264 = vld [vmem:[%s206 + $0x5c] sm:$0xf]
        %v265 = vld [vmem:[%s206 + $0x60] sm:$0xf]
        %v266 = vld [vmem:[%s206 + $0x64] sm:$0xf]
        %v267 = vld [vmem:[%s206 + $0x68] sm:$0xf]
        %v268 = vld [vmem:[%s206 + $0x6c] sm:$0xf]
        %v269 = vld [vmem:[%s206 + $0x70] sm:$0xf]
        %v270 = vld [vmem:[%s206 + $0x74] sm:$0xf]
        %v271 = vld [vmem:[%s206 + $0x78] sm:$0xf]
        %v272 = vld [vmem:[%s206 + $0x7c] sm:$0xf]
        %v273 = vld [vmem:[#allocation5] sm:$0xf]
        %v274 = vld [vmem:[#allocation5 + $0x4] sm:$0xf]
        %v275 = vld [vmem:[#allocation5 + $0x8] sm:$0xf]
        %v276 = vld [vmem:[#allocation5 + $0xc] sm:$0xf]
        %v277 = vld [vmem:[#allocation5 + $0x10] sm:$0xf]
        %v278 = vld [vmem:[#allocation5 + $0x14] sm:$0xf]
        %v279 = vld [vmem:[#allocation5 + $0x18] sm:$0xf]
        %v280 = vld [vmem:[#allocation5 + $0x1c] sm:$0xf]
        %v281 = vld [vmem:[#allocation5 + $0x20] sm:$0xf]
        %v282 = vld [vmem:[#allocation5 + $0x24] sm:$0xf]
        %v283 = vld [vmem:[#allocation5 + $0x28] sm:$0xf]
        %v284 = vld [vmem:[#allocation5 + $0x2c] sm:$0xf]
        %v285 = vld [vmem:[#allocation5 + $0x30] sm:$0xf]
        %v286 = vld [vmem:[#allocation5 + $0x34] sm:$0xf]
        %v287 = vld [vmem:[#allocation5 + $0x38] sm:$0xf]
        %v288 = vld [vmem:[#allocation5 + $0x3c] sm:$0xf]
        %v321 = vunpack.c.l.b16 %v241
        %v322 = vunpack.c.l.b16 %v242
        %v323 = vunpack.c.l.b16 %v243
        %v324 = vunpack.c.l.b16 %v244
        %v325 = vunpack.c.l.b16 %v245
        %v326 = vunpack.c.l.b16 %v246
        %v327 = vunpack.c.l.b16 %v247
        %v328 = vunpack.c.l.b16 %v248
        %v329 = vunpack.c.l.b16 %v249
        %v330 = vunpack.c.l.b16 %v250
        %v331 = vunpack.c.l.b16 %v251
        %v332 = vunpack.c.l.b16 %v252
        %v333 = vunpack.c.l.b16 %v253
        %v334 = vunpack.c.l.b16 %v254
        %v335 = vunpack.c.l.b16 %v255
        %v336 = vunpack.c.l.b16 %v256
        %v337 = vunpack.c.l.b16 %v257
        %v338 = vunpack.c.l.b16 %v258
        %v339 = vunpack.c.l.b16 %v259
        %v340 = vunpack.c.l.b16 %v260
        %v341 = vunpack.c.l.b16 %v261
        %v342 = vunpack.c.l.b16 %v262
        %v343 = vunpack.c.l.b16 %v263
        %v344 = vunpack.c.l.b16 %v264
        %v345 = vunpack.c.l.b16 %v265
        %v346 = vunpack.c.l.b16 %v266
        %v347 = vunpack.c.l.b16 %v267
        %v348 = vunpack.c.l.b16 %v268
        %v349 = vunpack.c.l.b16 %v269
        %v350 = vunpack.c.l.b16 %v270
        %v351 = vunpack.c.l.b16 %v271
        %v352 = vunpack.c.l.b16 %v272
        %v353 = vpack.c.b16 %v322, %v321
        %v354 = vpack.c.b16 %v324, %v323
        %v355 = vpack.c.b16 %v326, %v325
        %v356 = vpack.c.b16 %v328, %v327
        %v357 = vpack.c.b16 %v330, %v329
        %v358 = vpack.c.b16 %v332, %v331
        %v359 = vpack.c.b16 %v334, %v333
        %v360 = vpack.c.b16 %v336, %v335
        %v361 = vpack.c.b16 %v338, %v337
        %v362 = vpack.c.b16 %v340, %v339
        %v363 = vpack.c.b16 %v342, %v341
        %v364 = vpack.c.b16 %v344, %v343
        %v365 = vpack.c.b16 %v346, %v345
        %v366 = vpack.c.b16 %v348, %v347
        %v367 = vpack.c.b16 %v350, %v349
        %v368 = vpack.c.b16 %v352, %v351
        %v401 = vunpack.c.l.b16 %v273
        %v402 = vunpack.c.l.b16 %v274
        %v403 = vunpack.c.l.b16 %v275
        %v404 = vunpack.c.l.b16 %v276
        %v405 = vunpack.c.l.b16 %v277
        %v406 = vunpack.c.l.b16 %v278
        %v407 = vunpack.c.l.b16 %v279
        %v408 = vunpack.c.l.b16 %v280
        %v409 = vunpack.c.l.b16 %v281
        %v410 = vunpack.c.l.b16 %v282
        %v411 = vunpack.c.l.b16 %v283
        %v412 = vunpack.c.l.b16 %v284
        %v413 = vunpack.c.l.b16 %v285
        %v414 = vunpack.c.l.b16 %v286
        %v415 = vunpack.c.l.b16 %v287
        %v416 = vunpack.c.l.b16 %v288
        %v417 = vpack.c.b16 %v402, %v401
        %v418 = vpack.c.b16 %v404, %v403
        %v419 = vpack.c.b16 %v406, %v405
        %v420 = vpack.c.b16 %v408, %v407
        %v421 = vpack.c.b16 %v410, %v409
        %v422 = vpack.c.b16 %v412, %v411
        %v423 = vpack.c.b16 %v414, %v413
        %v424 = vpack.c.b16 %v416, %v415
        %433 = vmatprep.subr.bf16.mxu0 0
        %434 = vmatpush1.bf16.msra.mxu0 %v424
        %435 = vmatprep.subr.bf16.mxu0 0
        %436 = vmatpush1.bf16.msra.mxu0 %v423
        %437 = vmatprep.subr.bf16.mxu0 0
        %438 = vmatpush1.bf16.msra.mxu0 %v422
        %439 = vmatprep.subr.bf16.mxu0 0
        %440 = vmatpush1.bf16.msra.mxu0 %v421
        %441 = vmatprep.subr.bf16.mxu0 0
        %442 = vmatpush1.bf16.msra.mxu0 %v420
        %443 = vmatprep.subr.bf16.mxu0 0
        %444 = vmatpush1.bf16.msra.mxu0 %v419
        %445 = vmatprep.subr.bf16.mxu0 0
        %446 = vmatpush1.bf16.msra.mxu0 %v418
        %447 = vmatprep.subr.bf16.mxu0 0
        %448 = vmatpush1.bf16.msra.mxu0 %v417
        %449 = vmatprep.subr.bf16.mxu0 0
        %450 = vmatpush2.bf16.msra.mxu0 0
        %451 = vmatprep.subr.bf16.mxu0 0
        %452 = vmatpush2.bf16.msra.mxu0 0
        %453 = vmatprep.subr.bf16.mxu0 0
        %454 = vmatpush2.bf16.msra.mxu0 0
        %455 = vmatprep.subr.bf16.mxu0 0
        %456 = vmatpush2.bf16.msra.mxu0 0
        %457 = vmatprep.subr.bf16.mxu0 0
        %458 = vmatpush2.bf16.msra.mxu0 0
        %459 = vmatprep.subr.bf16.mxu0 0
        %460 = vmatpush2.bf16.msra.mxu0 0
        %461 = vmatprep.subr.bf16.mxu0 0
        %462 = vmatpush2.bf16.msra.mxu0 0
        %463 = vmatprep.subr.bf16.mxu0 0
        %464 = vmatpush2.bf16.msra.mxu0 0
        %465 = vmatprep.mubr.bf16.mxu0 0
        %466 = vmatmul.mubr.bf16.gmra.mxu0 %v353
        %v467 = vpop.f32.mrf.mxu0
        %v468 = vadd.f32 0.0, %v467
        %v469 = vpop.f32.mrf.mxu0
        %v470 = vpop.f32.mrf.mxu0
        %v471 = vadd.f32 0.0, %v470
        %v472 = vpop.f32.mrf.mxu0
        %473 = vmatprep.mubr.bf16.mxu0 0
        %474 = vmatmul.mubr.bf16.gmra.mxu0 %v354
        %v475 = vpop.f32.mrf.mxu0
        %v476 = vadd.f32 0.0, %v475
        %v477 = vpop.f32.mrf.mxu0
        %v478 = vpop.f32.mrf.mxu0
        %v479 = vadd.f32 0.0, %v478
        %v480 = vpop.f32.mrf.mxu0
        %481 = vmatprep.mubr.bf16.mxu0 0
        %482 = vmatmul.mubr.bf16.gmra.mxu0 %v355
        %v483 = vpop.f32.mrf.mxu0
        %v484 = vadd.f32 0.0, %v483
        %v485 = vpop.f32.mrf.mxu0
        %v486 = vpop.f32.mrf.mxu0
        %v487 = vadd.f32 0.0, %v486
        %v488 = vpop.f32.mrf.mxu0
        %489 = vmatprep.mubr.bf16.mxu0 0
        %490 = vmatmul.mubr.bf16.gmra.mxu0 %v356
        %v491 = vpop.f32.mrf.mxu0
        %v492 = vadd.f32 0.0, %v491
        %v493 = vpop.f32.mrf.mxu0
        %v494 = vpop.f32.mrf.mxu0
        %v495 = vadd.f32 0.0, %v494
        %v496 = vpop.f32.mrf.mxu0
        %497 = vmatprep.mubr.bf16.mxu0 0
        %498 = vmatmul.mubr.bf16.gmra.mxu0 %v357
        %v499 = vpop.f32.mrf.mxu0
        %v500 = vadd.f32 0.0, %v499
        %v501 = vpop.f32.mrf.mxu0
        %v502 = vpop.f32.mrf.mxu0
        %v503 = vadd.f32 0.0, %v502
        %v504 = vpop.f32.mrf.mxu0
        %505 = vmatprep.mubr.bf16.mxu0 0
        %506 = vmatmul.mubr.bf16.gmra.mxu0 %v358
        %v507 = vpop.f32.mrf.mxu0
        %v508 = vadd.f32 0.0, %v507
        %v509 = vpop.f32.mrf.mxu0
        %v510 = vpop.f32.mrf.mxu0
        %v511 = vadd.f32 0.0, %v510
        %v512 = vpop.f32.mrf.mxu0
        %513 = vmatprep.mubr.bf16.mxu0 0
        %514 = vmatmul.mubr.bf16.gmra.mxu0 %v359
        %v515 = vpop.f32.mrf.mxu0
        %v516 = vadd.f32 0.0, %v515
        %v517 = vpop.f32.mrf.mxu0
        %v518 = vpop.f32.mrf.mxu0
        %v519 = vadd.f32 0.0, %v518
        %v520 = vpop.f32.mrf.mxu0
        %521 = vmatprep.mubr.bf16.mxu0 0
        %522 = vmatmul.mubr.bf16.gmra.mxu0 %v360
        %v523 = vpop.f32.mrf.mxu0
        %v524 = vadd.f32 0.0, %v523
        %v525 = vpop.f32.mrf.mxu0
        %v526 = vpop.f32.mrf.mxu0
        %v527 = vadd.f32 0.0, %v526
        %v528 = vpop.f32.mrf.mxu0
        %529 = vmatprep.mubr.bf16.mxu0 0
        %530 = vmatmul.mubr.bf16.gmra.mxu0 %v361
        %v531 = vpop.f32.mrf.mxu0
        %v532 = vadd.f32 0.0, %v531
        %v533 = vpop.f32.mrf.mxu0
        %v534 = vpop.f32.mrf.mxu0
        %v535 = vadd.f32 0.0, %v534
        %v536 = vpop.f32.mrf.mxu0
        %537 = vmatprep.mubr.bf16.mxu0 0
        %538 = vmatmul.mubr.bf16.gmra.mxu0 %v362
        %v539 = vpop.f32.mrf.mxu0
        %v540 = vadd.f32 0.0, %v539
        %v541 = vpop.f32.mrf.mxu0
        %v542 = vpop.f32.mrf.mxu0
        %v543 = vadd.f32 0.0, %v542
        %v544 = vpop.f32.mrf.mxu0
        %545 = vmatprep.mubr.bf16.mxu0 0
        %546 = vmatmul.mubr.bf16.gmra.mxu0 %v363
        %v547 = vpop.f32.mrf.mxu0
        %v548 = vadd.f32 0.0, %v547
        %v549 = vpop.f32.mrf.mxu0
        %v550 = vpop.f32.mrf.mxu0
        %v551 = vadd.f32 0.0, %v550
        %v552 = vpop.f32.mrf.mxu0
        %553 = vmatprep.mubr.bf16.mxu0 0
        %554 = vmatmul.mubr.bf16.gmra.mxu0 %v364
        %v555 = vpop.f32.mrf.mxu0
        %v556 = vadd.f32 0.0, %v555
        %v557 = vpop.f32.mrf.mxu0
        %v558 = vpop.f32.mrf.mxu0
        %v559 = vadd.f32 0.0, %v558
        %v560 = vpop.f32.mrf.mxu0
        %561 = vmatprep.mubr.bf16.mxu0 0
        %562 = vmatmul.mubr.bf16.gmra.mxu0 %v365
        %v563 = vpop.f32.mrf.mxu0
        %v564 = vadd.f32 0.0, %v563
        %v565 = vpop.f32.mrf.mxu0
        %v566 = vpop.f32.mrf.mxu0
        %v567 = vadd.f32 0.0, %v566
        %v568 = vpop.f32.mrf.mxu0
        %569 = vmatprep.mubr.bf16.mxu0 0
        %570 = vmatmul.mubr.bf16.gmra.mxu0 %v366
        %v571 = vpop.f32.mrf.mxu0
        %v572 = vadd.f32 0.0, %v571
        %v573 = vpop.f32.mrf.mxu0
        %v574 = vpop.f32.mrf.mxu0
        %v575 = vadd.f32 0.0, %v574
        %v576 = vpop.f32.mrf.mxu0
        %577 = vmatprep.mubr.bf16.mxu0 0
        %578 = vmatmul.mubr.bf16.gmra.mxu0 %v367
        %v579 = vpop.f32.mrf.mxu0
        %v580 = vadd.f32 0.0, %v579
        %v581 = vpop.f32.mrf.mxu0
        %v582 = vpop.f32.mrf.mxu0
        %v583 = vadd.f32 0.0, %v582
        %v584 = vpop.f32.mrf.mxu0
        %585 = vmatprep.mubr.bf16.mxu0 0
        %586 = vmatmul.mubr.bf16.gmra.mxu0 %v368
        %v587 = vpop.f32.mrf.mxu0
        %v588 = vadd.f32 0.0, %v587
        %v589 = vpop.f32.mrf.mxu0
        %v590 = vpop.f32.mrf.mxu0
        %v591 = vadd.f32 0.0, %v590
        %v592 = vpop.f32.mrf.mxu0
        %593 = vdwg.mxu0
        %v594 = vadd.f32 %v468, %v471
        %v595 = vadd.f32 %v594, %v476
        %v596 = vadd.f32 %v595, %v479
        %v597 = vadd.f32 %v596, %v484
        %v598 = vadd.f32 %v597, %v487
        %v599 = vadd.f32 %v598, %v492
        %v600 = vadd.f32 %v599, %v495
        %v601 = vadd.f32 %v600, %v500
        %v602 = vadd.f32 %v601, %v503
        %v603 = vadd.f32 %v602, %v508
        %v604 = vadd.f32 %v603, %v511
        %v605 = vadd.f32 %v604, %v516
        %v606 = vadd.f32 %v605, %v519
        %v607 = vadd.f32 %v606, %v524
        %v608 = vadd.f32 %v607, %v527
        %v609 = vadd.f32 %v608, %v532
        %v610 = vadd.f32 %v609, %v535
        %v611 = vadd.f32 %v610, %v540
        %v612 = vadd.f32 %v611, %v543
        %v613 = vadd.f32 %v612, %v548
        %v614 = vadd.f32 %v613, %v551
        %v615 = vadd.f32 %v614, %v556
        %v616 = vadd.f32 %v615, %v559
        %v617 = vadd.f32 %v616, %v564
        %v618 = vadd.f32 %v617, %v567
        %v619 = vadd.f32 %v618, %v572
        %v620 = vadd.f32 %v619, %v575
        %v621 = vadd.f32 %v620, %v580
        %v622 = vadd.f32 %v621, %v583
        %v623 = vadd.f32 %v622, %v588
        %v624 = vadd.f32 %v623, %v591
        %v625 = vrot.slane %v624, 4
        %v626 = vadd.f32 %v624, %v625
        %v627 = vrot.slane %v626, 2
        %v628 = vadd.f32 %v626, %v627
        %v629 = vrot.slane %v628, 1
        %v630 = vadd.f32 %v628, %v629
        %631 = vst [vmem:[%s237] sm:$0x1] %v630
        %v632 = vmul.f32 %v468, %v468
        %v633 = vmul.f32 %v471, %v471
        %v634 = vmul.f32 %v476, %v476
        %v635 = vmul.f32 %v479, %v479
        %v636 = vmul.f32 %v484, %v484
        %v637 = vmul.f32 %v487, %v487
        %v638 = vmul.f32 %v492, %v492
        %v639 = vmul.f32 %v495, %v495
        %v640 = vmul.f32 %v500, %v500
        %v641 = vmul.f32 %v503, %v503
        %v642 = vmul.f32 %v508, %v508
        %v643 = vmul.f32 %v511, %v511
        %v644 = vmul.f32 %v516, %v516
        %v645 = vmul.f32 %v519, %v519
        %v646 = vmul.f32 %v524, %v524
        %v647 = vmul.f32 %v527, %v527
        %v648 = vmul.f32 %v532, %v532
        %v649 = vmul.f32 %v535, %v535
        %v650 = vmul.f32 %v540, %v540
        %v651 = vmul.f32 %v543, %v543
        %v652 = vmul.f32 %v548, %v548
        %v653 = vmul.f32 %v551, %v551
        %v654 = vmul.f32 %v556, %v556
        %v655 = vmul.f32 %v559, %v559
        %v656 = vmul.f32 %v564, %v564
        %v657 = vmul.f32 %v567, %v567
        %v658 = vmul.f32 %v572, %v572
        %v659 = vmul.f32 %v575, %v575
        %v660 = vmul.f32 %v580, %v580
        %v661 = vmul.f32 %v583, %v583
        %v662 = vmul.f32 %v588, %v588
        %v663 = vmul.f32 %v591, %v591
        %v664 = vadd.f32 %v632, %v633
        %v665 = vadd.f32 %v664, %v634
        %v666 = vadd.f32 %v665, %v635
        %v667 = vadd.f32 %v666, %v636
        %v668 = vadd.f32 %v667, %v637
        %v669 = vadd.f32 %v668, %v638
        %v670 = vadd.f32 %v669, %v639
        %v671 = vadd.f32 %v670, %v640
        %v672 = vadd.f32 %v671, %v641
        %v673 = vadd.f32 %v672, %v642
        %v674 = vadd.f32 %v673, %v643
        %v675 = vadd.f32 %v674, %v644
        %v676 = vadd.f32 %v675, %v645
        %v677 = vadd.f32 %v676, %v646
        %v678 = vadd.f32 %v677, %v647
        %v679 = vadd.f32 %v678, %v648
        %v680 = vadd.f32 %v679, %v649
        %v681 = vadd.f32 %v680, %v650
        %v682 = vadd.f32 %v681, %v651
        %v683 = vadd.f32 %v682, %v652
        %v684 = vadd.f32 %v683, %v653
        %v685 = vadd.f32 %v684, %v654
        %v686 = vadd.f32 %v685, %v655
        %v687 = vadd.f32 %v686, %v656
        %v688 = vadd.f32 %v687, %v657
        %v689 = vadd.f32 %v688, %v658
        %v690 = vadd.f32 %v689, %v659
        %v691 = vadd.f32 %v690, %v660
        %v692 = vadd.f32 %v691, %v661
        %v693 = vadd.f32 %v692, %v662
        %v694 = vadd.f32 %v693, %v663
        %v695 = vrot.slane %v694, 4
        %v696 = vadd.f32 %v694, %v695
        %v697 = vrot.slane %v696, 2
        %v698 = vadd.f32 %v696, %v697
        %v699 = vrot.slane %v698, 1
        %v700 = vadd.f32 %v698, %v699
        %701 = vst [vmem:[%s237 + $0x1] sm:$0x1] %v700
        %v702 = vpack.c.bf16 %v471, %v468
        %v703 = vpack.c.bf16 %v479, %v476
        %v704 = vpack.c.bf16 %v487, %v484
        %v705 = vpack.c.bf16 %v495, %v492
        %v706 = vpack.c.bf16 %v503, %v500
        %v707 = vpack.c.bf16 %v511, %v508
        %v708 = vpack.c.bf16 %v519, %v516
        %v709 = vpack.c.bf16 %v527, %v524
        %v710 = vpack.c.bf16 %v535, %v532
        %v711 = vpack.c.bf16 %v543, %v540
        %v712 = vpack.c.bf16 %v551, %v548
        %v713 = vpack.c.bf16 %v559, %v556
        %v714 = vpack.c.bf16 %v567, %v564
        %v715 = vpack.c.bf16 %v575, %v572
        %v716 = vpack.c.bf16 %v583, %v580
        %v717 = vpack.c.bf16 %v591, %v588
        %v734 = vunpack.c.l.b16 %v702
        %v735 = vunpack.c.h.b16 %v702
        %v736 = vunpack.c.l.b16 %v703
        %v737 = vunpack.c.h.b16 %v703
        %v738 = vunpack.c.l.b16 %v704
        %v739 = vunpack.c.h.b16 %v704
        %v740 = vunpack.c.l.b16 %v705
        %v741 = vunpack.c.h.b16 %v705
        %v742 = vunpack.c.l.b16 %v706
        %v743 = vunpack.c.h.b16 %v706
        %v744 = vunpack.c.l.b16 %v707
        %v745 = vunpack.c.h.b16 %v707
        %v746 = vunpack.c.l.b16 %v708
        %v747 = vunpack.c.h.b16 %v708
        %v748 = vunpack.c.l.b16 %v709
        %v749 = vunpack.c.h.b16 %v709
        %v750 = vunpack.c.l.b16 %v710
        %v751 = vunpack.c.h.b16 %v710
        %v752 = vunpack.c.l.b16 %v711
        %v753 = vunpack.c.h.b16 %v711
        %v754 = vunpack.c.l.b16 %v712
        %v755 = vunpack.c.h.b16 %v712
        %v756 = vunpack.c.l.b16 %v713
        %v757 = vunpack.c.h.b16 %v713
        %v758 = vunpack.c.l.b16 %v714
        %v759 = vunpack.c.h.b16 %v714
        %v760 = vunpack.c.l.b16 %v715
        %v761 = vunpack.c.h.b16 %v715
        %v762 = vunpack.c.l.b16 %v716
        %v763 = vunpack.c.h.b16 %v716
        %v764 = vunpack.c.l.b16 %v717
        %v765 = vunpack.c.h.b16 %v717
        %v766 = vpack.c.b16 %v734, %v734
        %v767 = vpack.c.b16 %v735, %v735
        %v768 = vpack.c.b16 %v736, %v736
        %v769 = vpack.c.b16 %v737, %v737
        %v770 = vpack.c.b16 %v738, %v738
        %v771 = vpack.c.b16 %v739, %v739
        %v772 = vpack.c.b16 %v740, %v740
        %v773 = vpack.c.b16 %v741, %v741
        %v774 = vpack.c.b16 %v742, %v742
        %v775 = vpack.c.b16 %v743, %v743
        %v776 = vpack.c.b16 %v744, %v744
        %v777 = vpack.c.b16 %v745, %v745
        %v778 = vpack.c.b16 %v746, %v746
        %v779 = vpack.c.b16 %v747, %v747
        %v780 = vpack.c.b16 %v748, %v748
        %v781 = vpack.c.b16 %v749, %v749
        %v782 = vpack.c.b16 %v750, %v750
        %v783 = vpack.c.b16 %v751, %v751
        %v784 = vpack.c.b16 %v752, %v752
        %v785 = vpack.c.b16 %v753, %v753
        %v786 = vpack.c.b16 %v754, %v754
        %v787 = vpack.c.b16 %v755, %v755
        %v788 = vpack.c.b16 %v756, %v756
        %v789 = vpack.c.b16 %v757, %v757
        %v790 = vpack.c.b16 %v758, %v758
        %v791 = vpack.c.b16 %v759, %v759
        %v792 = vpack.c.b16 %v760, %v760
        %v793 = vpack.c.b16 %v761, %v761
        %v794 = vpack.c.b16 %v762, %v762
        %v795 = vpack.c.b16 %v763, %v763
        %v796 = vpack.c.b16 %v764, %v764
        %v797 = vpack.c.b16 %v765, %v765
        %830 = vst [vmem:[%s230] sm:$0xf] %v766
        %831 = vst [vmem:[%s230 + $0x4] sm:$0xf] %v767
        %832 = vst [vmem:[%s230 + $0x8] sm:$0xf] %v768
        %833 = vst [vmem:[%s230 + $0xc] sm:$0xf] %v769
        %834 = vst [vmem:[%s230 + $0x10] sm:$0xf] %v770
        %835 = vst [vmem:[%s230 + $0x14] sm:$0xf] %v771
        %836 = vst [vmem:[%s230 + $0x18] sm:$0xf] %v772
        %837 = vst [vmem:[%s230 + $0x1c] sm:$0xf] %v773
        %838 = vst [vmem:[%s230 + $0x20] sm:$0xf] %v774
        %839 = vst [vmem:[%s230 + $0x24] sm:$0xf] %v775
        %840 = vst [vmem:[%s230 + $0x28] sm:$0xf] %v776
        %841 = vst [vmem:[%s230 + $0x2c] sm:$0xf] %v777
        %842 = vst [vmem:[%s230 + $0x30] sm:$0xf] %v778
        %843 = vst [vmem:[%s230 + $0x34] sm:$0xf] %v779
        %844 = vst [vmem:[%s230 + $0x38] sm:$0xf] %v780
        %845 = vst [vmem:[%s230 + $0x3c] sm:$0xf] %v781
        %846 = vst [vmem:[%s230 + $0x40] sm:$0xf] %v782
        %847 = vst [vmem:[%s230 + $0x44] sm:$0xf] %v783
        %848 = vst [vmem:[%s230 + $0x48] sm:$0xf] %v784
        %849 = vst [vmem:[%s230 + $0x4c] sm:$0xf] %v785
        %850 = vst [vmem:[%s230 + $0x50] sm:$0xf] %v786
        %851 = vst [vmem:[%s230 + $0x54] sm:$0xf] %v787
        %852 = vst [vmem:[%s230 + $0x58] sm:$0xf] %v788
        %853 = vst [vmem:[%s230 + $0x5c] sm:$0xf] %v789
        %854 = vst [vmem:[%s230 + $0x60] sm:$0xf] %v790
        %855 = vst [vmem:[%s230 + $0x64] sm:$0xf] %v791
        %856 = vst [vmem:[%s230 + $0x68] sm:$0xf] %v792
        %857 = vst [vmem:[%s230 + $0x6c] sm:$0xf] %v793
        %858 = vst [vmem:[%s230 + $0x70] sm:$0xf] %v794
        %859 = vst [vmem:[%s230 + $0x74] sm:$0xf] %v795
        %860 = vst [vmem:[%s230 + $0x78] sm:$0xf] %v796
        %861 = vst [vmem:[%s230 + $0x7c] sm:$0xf] %v797
        %s862 = sand.u32 %s99, 1
        %s863 = scalar_lea.sflag [#allocation4], %s862
        %s864 = sand.u32 %s99, 1
        %s865 = smul.addr %s864, 128
        %s866 = scalar_lea.vmem [#allocation7], %s865
        %s867 = sand.u32 %s127, 1
        %s868 = scalar_lea.sflag [#allocation9], %s867
        %s869 = sand.u32 %s127, 1
        %s870 = smul.addr %s869, 2
        %s871 = scalar_lea.vmem [#allocation8], %s870
        // Predicated region
        $region37: #{tpu_custom_call.1} parent=27 // pred_check
          %p872 = pneg %p109
        $region38: #{tpu_custom_call.1} parent=27 // pred_check_branch
          %874 = sbr.rel (%p872) target = $region40
        $region39: #{tpu_custom_call.1} parent=27 // pred_region
          %s875 = smul.u32 32, %s29
          %s877 = ssub.s32 2048, 2048
          %878 = vsyncadd %s863, %s877
          %s879 = sadd.s32 %s30, %s875
          %s880 = smul.addr %s879, 64
          %s881 = scalar_lea.hbm %s2, %s880
          %s882 = sshll.u32 %s866, 4
          %s883 = int_to_ptr.vmem [resolvable:$true] %s882
          %888 = dma.vmem_to_hbm [thread:$0]  %s883, 2048, %s881, %s863, 64, 64, 4
        $region40: #{tpu_custom_call.1} parent=27 // pred_fallthru
          _
        // Predicated region
        $region41: #{tpu_custom_call.1} parent=27 // pred_check
          %p889 = pneg %p137
        $region42: #{tpu_custom_call.1} parent=27 // pred_check_branch
          %891 = sbr.rel (%p889) target = $region44
        $region43: #{tpu_custom_call.1} parent=27 // pred_region
          %s893 = ssub.s32 32, 32
          %894 = vsyncadd %s868, %s893
          %s895 = sadd.s32 %s30, %s29
          %s896 = smul.addr %s895, 32
          %s897 = scalar_lea.hbm %s3, %s896
          %s899 = sshll.u32 %s871, 4
          %s900 = int_to_ptr.vmem [resolvable:$true] %s899
          %902 = dma.vmem_to_hbm [thread:$0]  %s900, 32, %s897, %s868
        $region44: #{tpu_custom_call.1} parent=27 // pred_fallthru
          _
      $region28: #{tpu_custom_call.1} parent=5 // pred_fallthru
        _
      %p903 = scmp.le.s32.totalorder 2, %s20
      // Predicated region
      $region45: #{tpu_custom_call.1} parent=5 // pred_check
        %p904 = pneg %p903
      $region46: #{tpu_custom_call.1} parent=5 // pred_check_branch
        %906 = sbr.rel (%p904) target = $region48
      $region47: #{tpu_custom_call.1} parent=5 // pred_region
        %s907 = ssub.s32 %s20, 2
        // Predicated region
        $region49: #{tpu_custom_call.1} parent=47 // pred_check
          %p908 = pneg %p115
        $region50: #{tpu_custom_call.1} parent=47 // pred_check_branch
          %910 = sbr.rel (%p908) target = $region52
        $region51: #{tpu_custom_call.1} parent=47 // pred_region
          %s911 = sand.u32 %s100, 1
          %s912 = scalar_lea.sflag [#allocation4], %s911
          %s913 = sand.u32 %s100, 1
          %s914 = smul.addr %s913, 128
          %s915 = scalar_lea.vmem [#allocation7], %s914
          %916 = dma.done %s912, 2048
        $region52: #{tpu_custom_call.1} parent=47 // pred_fallthru
          _
        // Predicated region
        $region53: #{tpu_custom_call.1} parent=47 // pred_check
          %p917 = pneg %p143
        $region54: #{tpu_custom_call.1} parent=47 // pred_check_branch
          %919 = sbr.rel (%p917) target = $region56
        $region55: #{tpu_custom_call.1} parent=47 // pred_region
          %s920 = sand.u32 %s128, 1
          %s921 = scalar_lea.sflag [#allocation9], %s920
          %s922 = sand.u32 %s128, 1
          %s923 = smul.addr %s922, 2
          %s924 = scalar_lea.vmem [#allocation8], %s923
          %925 = dma.done %s921, 32
        $region56: #{tpu_custom_call.1} parent=47 // pred_fallthru
          _
      $region48: #{tpu_custom_call.1} parent=5 // pred_fallthru
        _
    $region6: #{tpu_custom_call.1} parent=1 // loop_footer
      %s24 = sadd.s32 1, %s20
    $region7: #{tpu_custom_call.1} parent=1 // loop_footer_branch
      %19 = sbr.rel target = $region3
    $region8: #{tpu_custom_call.1} parent=1 // loop_exit
      _
    %926 = vsyncpa [#allocation3], 1
    %s927 = scalar_lea.sflag [#allocation3], 1
    %928 = vsyncpa %s927, 1
    %929 = vsyncpa [#allocation6], 1
    %930 = vsyncpa [#allocation4], 1
    %s931 = scalar_lea.sflag [#allocation4], 1
    %932 = vsyncpa %s931, 1
    %933 = vsyncpa [#allocation9], 1
    %s934 = scalar_lea.sflag [#allocation9], 1
    %935 = vsyncpa %s934, 1

</llo_original>
